<compile_context>
chip_gen: v7x
topology: tpu7x:2x2x1
jax: 0.10.0
libtpu: 0.0.40
codegen_flags: <defaults>
</compile_context>

<pallas_src>
import functools

import jax
import jax.numpy as jnp
from jax.experimental import pallas as pl
from jax.experimental.pallas import tpu as pltpu

_LANE = 512             # lane axis: multiple of 128 -> dense, unmasked stores
_MAX_BLOCK_ROWS = 1024  # 1024 * 512 * 4 B = 2 MiB per f32 block
_VIEWS = ("L-CC", "L-MLO", "R-CC", "R-MLO")


def _inv_normal_cdf(p):
  """Acklam's rational approximation of the inverse normal CDF (f32).

  Uses only mul/add/where + log/sqrt/div, all of which lower on TPU (Mosaic)
  and on the CPU interpret fallback.  |relative error| < 1.2e-9.
  """
  a = (-3.969683028665376e+01, 2.209460984245205e+02, -2.759285104469687e+02,
       1.383577518672690e+02, -3.066479806614716e+01, 2.506628277459239e+00)
  b = (-5.447609879822406e+01, 1.615858368580409e+02, -1.556989798598866e+02,
       6.680131188771972e+01, -1.328068155288572e+01)
  c = (-7.784894002430293e-03, -3.223964580411365e-01, -2.400758277161838e+00,
       -2.549732539343734e+00, 4.374664141464968e+00, 2.938163982698783e+00)
  d = (7.784695709041462e-03, 3.224671290700398e-01, 2.445134137142996e+00,
       3.754408661907416e+00)
  plow = 0.02425

  # Central region: rational function of r = q^2.
  q = p - 0.5
  r = q * q
  num_c = ((((a[0] * r + a[1]) * r + a[2]) * r + a[3]) * r + a[4]) * r + a[5]
  den_c = ((((b[0] * r + b[1]) * r + b[2]) * r + b[3]) * r + b[4]) * r + 1.0
  central = q * num_c / den_c

  # Tail region (symmetric): rational function of s = sqrt(-2 ln(min(p, 1-p))).
  p_tail = jnp.minimum(p, 1.0 - p)
  s = jnp.sqrt(-2.0 * jnp.log(p_tail))
  num_t = ((((c[0] * s + c[1]) * s + c[2]) * s + c[3]) * s + c[4]) * s + c[5]
  den_t = (((d[0] * s + d[1]) * s + d[2]) * s + d[3]) * s + 1.0
  tail = num_t / den_t                     # lower-tail value (negative)
  tail = jnp.where(q < 0.0, tail, -tail)   # mirror for the upper tail

  return jnp.where(p_tail < plow, tail, central)


def _gaussian_noise_kernel(seed_ref, x_ref, o_ref, *, std):
  """out = x + std * N(0, 1); noise is a pure function of (seed, elem index)."""
  rows, lanes = x_ref.shape
  block_elems = rows * lanes

  # Global element index of every lane in this block (unique per block).
  base = pl.program_id(0) * block_elems
  row_ids = jax.lax.broadcasted_iota(jnp.int32, (rows, lanes), 0)
  lane_ids = jax.lax.broadcasted_iota(jnp.int32, (rows, lanes), 1)
  idx = base + row_ids * lanes + lane_ids

  # Counter-based PRNG: lowbias32 integer hash of (index XOR mixed seed).
  seed = seed_ref[0].astype(jnp.uint32) * jnp.uint32(0x9E3779B1)
  h = idx.astype(jnp.uint32) ^ seed
  h = h ^ (h >> 16)
  h = h * jnp.uint32(0x7FEB352D)
  h = h ^ (h >> 15)
  h = h * jnp.uint32(0x846CA68B)
  h = h ^ (h >> 16)

  # Top 24 bits -> uniform in (0, 1), strictly inside the open interval.
  bits24 = (h >> 8).astype(jnp.int32)
  u = (bits24.astype(jnp.float32) + 0.5) * jnp.float32(1.0 / (1 << 24))

  z = _inv_normal_cdf(u)
  o_ref[...] = (x_ref[...].astype(jnp.float32)
                + jnp.float32(std) * z).astype(o_ref.dtype)


def _add_gaussian_noise(view, std, seed):
  """view: any-shape float array; seed: (1,) int32. Returns view + N(0, std^2)."""
  orig_shape, orig_dtype = view.shape, view.dtype
  n = view.size
  flat = view.reshape(-1)

  # Lane-dense 2D layout. Fast path (typical image tensors): zero-copy reshape.
  if n % _LANE == 0:
    x2d = flat.reshape(n // _LANE, _LANE)
    padded = False
  else:
    pad = (-n) % _LANE
    x2d = jnp.pad(flat, (0, pad)).reshape(-1, _LANE)
    padded = True

  rows = x2d.shape[0]
  if rows <= _MAX_BLOCK_ROWS:
    block_rows = rows            # single full-extent block: no (8,128) issue
  else:
    block_rows = _MAX_BLOCK_ROWS  # multiple of 8/16/32 -> valid for any dtype
  grid = pl.cdiv(rows, block_rows)  # ragged last block handled by Pallas

  kernel = functools.partial(_gaussian_noise_kernel, std=float(std))
  padded_elems = rows * _LANE
  cost = pl.CostEstimate(
      flops=70 * padded_elems,
      transcendentals=4 * padded_elems,
      bytes_accessed=2 * padded_elems * orig_dtype.itemsize,
  )

  out2d = pl.pallas_call(
      kernel,
      out_shape=jax.ShapeDtypeStruct((rows, _LANE), orig_dtype),
      grid_spec=pltpu.PrefetchScalarGridSpec(
          num_scalar_prefetch=1,
          grid=(grid,),
          in_specs=[pl.BlockSpec((block_rows, _LANE), lambda i, s: (i, 0))],
          out_specs=pl.BlockSpec((block_rows, _LANE), lambda i, s: (i, 0)),
      ),
      compiler_params=pltpu.CompilerParams(
          dimension_semantics=("parallel",),
          vmem_limit_bytes=32 * 1024 * 1024,
      ),
      cost_estimate=cost,
  )(seed, x2d)

  out_flat = out2d.reshape(-1)
  if padded:
    out_flat = out_flat[:n]
  return out_flat.reshape(orig_shape)


def _all_views_forward(x, key, std):
  """All four views in a single jitted graph (one dispatch from Python)."""
  seeds = jax.random.randint(key, (len(_VIEWS),), 0, 2**31 - 1, dtype=jnp.int32)
  return {
      view: _add_gaussian_noise(x[view], std, seeds[i:i + 1])
      for i, view in enumerate(_VIEWS)
  }


class AllViewsGaussianNoise:
  """Add gaussian noise across all 4 views (Pallas TPU implementation)."""

  VIEWS = _VIEWS

  def __init__(self, gaussian_noise_std):
    self.gaussian_noise_std = gaussian_noise_std
    self.training = True
    self._fwd = None
    if gaussian_noise_std:
      self._fwd = jax.jit(
          functools.partial(_all_views_forward, std=float(gaussian_noise_std)))

  def __call__(self, x, key):
    if not self.gaussian_noise_std or not self.training:
      return x
    return self._fwd(x, key)


if __name__ == "__main__":
  std = 0.1
  key = jax.random.PRNGKey(0)
  kdata, knoise = jax.random.split(key)

  view_shape = (2, 1, 16, 16)
  views = {}
  for i, name in enumerate(AllViewsGaussianNoise.VIEWS):
    views[name] = jax.random.normal(jax.random.fold_in(kdata, i), view_shape,
                                    jnp.float32)

  layer = AllViewsGaussianNoise(std)

  # --- training mode: noise is added through the Pallas kernel -------------
  out = jax.block_until_ready(layer(views, knoise))

  # --- eval mode / zero std: identity (returns the input dict untouched) ---
  layer.training = False
  assert layer(views, knoise) is views
  layer.training = True
  assert AllViewsGaussianNoise(0.0)(views, knoise) is views

  # --- sanity checks on the noisy output -----------------------------------
  noise_samples = []
  for name in AllViewsGaussianNoise.VIEWS:
    assert out[name].shape == views[name].shape
    assert out[name].dtype == views[name].dtype
    noise_samples.append((out[name] - views[name]).reshape(-1))
  noise = jnp.concatenate(noise_samples)          # 4 * 512 = 2048 samples

  assert float(jnp.max(jnp.abs(noise))) > 0.0     # noise really added
  assert abs(float(jnp.mean(noise))) < 0.02       # zero-mean (~9 sigma bound)
  sample_std = float(jnp.std(noise))
  assert abs(sample_std - std) < 0.2 * std        # correct std (~12 sigma bound)

  # Different views draw independent noise (different per-view seeds).
  n_lcc = out["L-CC"] - views["L-CC"]
  n_rcc = out["R-CC"] - views["R-CC"]
  assert float(jnp.max(jnp.abs(n_lcc - n_rcc))) > 1e-6

  print("KERNEL_OK")
</pallas_src>

<mosaic_0001>
module attributes {stable_mosaic.version = 11 : i64} {
  func.func @_gaussian_noise_kernel(%arg0: i32, %arg1: memref<1xi32, #tpu.memory_space<smem>>, %arg2: memref<1x512xf32, #tpu.memory_space<vmem>>, %arg3: memref<1x512xf32, #tpu.memory_space<vmem>>) attributes {dimension_semantics = [#tpu.dimension_semantics<parallel>], iteration_bounds = array<i64: 1>, scalar_prefetch = 1 : i64, scratch_operands = 0 : i64, tpu.core_type = #tpu.core_type<tc>, window_params = [{transform_indices = @transform_0, window_bounds = array<i64: 1, 512>}, {transform_indices = @transform_1, window_bounds = array<i64: 1, 512>}]} {
    %c512_i32 = arith.constant 512 : i32
    %0 = arith.muli %arg0, %c512_i32 : i32
    %1 = tpu.iota {dimensions = array<i32: 0>} : vector<1x512xi32>
    %2 = tpu.iota {dimensions = array<i32: 1>} : vector<1x512xi32>
    %c512_i32_0 = arith.constant 512 : i32
    %3 = vector.broadcast %c512_i32_0 : i32 to vector<1x512xi32>
    %4 = arith.muli %1, %3 : vector<1x512xi32>
    %5 = vector.broadcast %0 : i32 to vector<1x512xi32>
    %6 = arith.addi %5, %4 : vector<1x512xi32>
    %7 = arith.addi %6, %2 : vector<1x512xi32>
    %c0 = arith.constant 0 : index
    %8 = memref.load %arg1[%c0] : memref<1xi32, #tpu.memory_space<smem>>
    %c-1640531535_i32 = arith.constant -1640531535 : i32
    %9 = arith.muli %8, %c-1640531535_i32 : i32
    %10 = vector.broadcast %9 : i32 to vector<1x512xi32>
    %11 = arith.xori %7, %10 : vector<1x512xi32>
    %c16_i32 = arith.constant 16 : i32
    %12 = vector.broadcast %c16_i32 : i32 to vector<1x512xi32>
    %13 = arith.shrui %11, %12 : vector<1x512xi32>
    %14 = arith.xori %11, %13 : vector<1x512xi32>
    %c2146121005_i32 = arith.constant 2146121005 : i32
    %15 = vector.broadcast %c2146121005_i32 : i32 to vector<1x512xi32>
    %16 = arith.muli %14, %15 : vector<1x512xi32>
    %c15_i32 = arith.constant 15 : i32
    %17 = vector.broadcast %c15_i32 : i32 to vector<1x512xi32>
    %18 = arith.shrui %16, %17 : vector<1x512xi32>
    %19 = arith.xori %16, %18 : vector<1x512xi32>
    %c-2073254261_i32 = arith.constant -2073254261 : i32
    %20 = vector.broadcast %c-2073254261_i32 : i32 to vector<1x512xi32>
    %21 = arith.muli %19, %20 : vector<1x512xi32>
    %c16_i32_1 = arith.constant 16 : i32
    %22 = vector.broadcast %c16_i32_1 : i32 to vector<1x512xi32>
    %23 = arith.shrui %21, %22 : vector<1x512xi32>
    %24 = arith.xori %21, %23 : vector<1x512xi32>
    %c8_i32 = arith.constant 8 : i32
    %25 = vector.broadcast %c8_i32 : i32 to vector<1x512xi32>
    %26 = arith.shrui %24, %25 : vector<1x512xi32>
    %27 = arith.sitofp %26 : vector<1x512xi32> to vector<1x512xf32>
    %cst = arith.constant 5.000000e-01 : f32
    %28 = vector.broadcast %cst : f32 to vector<1x512xf32>
    %29 = arith.addf %27, %28 : vector<1x512xf32>
    %cst_2 = arith.constant 5.96046448E-8 : f32
    %30 = vector.broadcast %cst_2 : f32 to vector<1x512xf32>
    %31 = arith.mulf %29, %30 : vector<1x512xf32>
    %cst_3 = arith.constant 5.000000e-01 : f32
    %32 = vector.broadcast %cst_3 : f32 to vector<1x512xf32>
    %33 = arith.subf %31, %32 : vector<1x512xf32>
    %34 = arith.mulf %33, %33 : vector<1x512xf32>
    %cst_4 = arith.constant -39.6968307 : f32
    %35 = vector.broadcast %cst_4 : f32 to vector<1x512xf32>
    %36 = arith.mulf %35, %34 : vector<1x512xf32>
    %cst_5 = arith.constant 220.946106 : f32
    %37 = vector.broadcast %cst_5 : f32 to vector<1x512xf32>
    %38 = arith.addf %36, %37 : vector<1x512xf32>
    %39 = arith.mulf %38, %34 : vector<1x512xf32>
    %cst_6 = arith.constant -275.928497 : f32
    %40 = vector.broadcast %cst_6 : f32 to vector<1x512xf32>
    %41 = arith.addf %39, %40 : vector<1x512xf32>
    %42 = arith.mulf %41, %34 : vector<1x512xf32>
    %cst_7 = arith.constant 138.357758 : f32
    %43 = vector.broadcast %cst_7 : f32 to vector<1x512xf32>
    %44 = arith.addf %42, %43 : vector<1x512xf32>
    %45 = arith.mulf %44, %34 : vector<1x512xf32>
    %cst_8 = arith.constant -30.6647987 : f32
    %46 = vector.broadcast %cst_8 : f32 to vector<1x512xf32>
    %47 = arith.addf %45, %46 : vector<1x512xf32>
    %48 = arith.mulf %47, %34 : vector<1x512xf32>
    %cst_9 = arith.constant 2.50662827 : f32
    %49 = vector.broadcast %cst_9 : f32 to vector<1x512xf32>
    %50 = arith.addf %48, %49 : vector<1x512xf32>
    %cst_10 = arith.constant -54.4760971 : f32
    %51 = vector.broadcast %cst_10 : f32 to vector<1x512xf32>
    %52 = arith.mulf %51, %34 : vector<1x512xf32>
    %cst_11 = arith.constant 161.585831 : f32
    %53 = vector.broadcast %cst_11 : f32 to vector<1x512xf32>
    %54 = arith.addf %52, %53 : vector<1x512xf32>
    %55 = arith.mulf %54, %34 : vector<1x512xf32>
    %cst_12 = arith.constant -155.698975 : f32
    %56 = vector.broadcast %cst_12 : f32 to vector<1x512xf32>
    %57 = arith.addf %55, %56 : vector<1x512xf32>
    %58 = arith.mulf %57, %34 : vector<1x512xf32>
    %cst_13 = arith.constant 66.8013153 : f32
    %59 = vector.broadcast %cst_13 : f32 to vector<1x512xf32>
    %60 = arith.addf %58, %59 : vector<1x512xf32>
    %61 = arith.mulf %60, %34 : vector<1x512xf32>
    %cst_14 = arith.constant -13.2806816 : f32
    %62 = vector.broadcast %cst_14 : f32 to vector<1x512xf32>
    %63 = arith.addf %61, %62 : vector<1x512xf32>
    %64 = arith.mulf %63, %34 : vector<1x512xf32>
    %cst_15 = arith.constant 1.000000e+00 : f32
    %65 = vector.broadcast %cst_15 : f32 to vector<1x512xf32>
    %66 = arith.addf %64, %65 : vector<1x512xf32>
    %67 = arith.mulf %33, %50 : vector<1x512xf32>
    %68 = arith.divf %67, %66 : vector<1x512xf32>
    %cst_16 = arith.constant 1.000000e+00 : f32
    %69 = vector.broadcast %cst_16 : f32 to vector<1x512xf32>
    %70 = arith.subf %69, %31 : vector<1x512xf32>
    %71 = arith.minimumf %31, %70 : vector<1x512xf32>
    %72 = math.log %71 : vector<1x512xf32>
    %cst_17 = arith.constant -2.000000e+00 : f32
    %73 = vector.broadcast %cst_17 : f32 to vector<1x512xf32>
    %74 = arith.mulf %73, %72 : vector<1x512xf32>
    %75 = math.sqrt %74 : vector<1x512xf32>
    %cst_18 = arith.constant -0.0077848942 : f32
    %76 = vector.broadcast %cst_18 : f32 to vector<1x512xf32>
    %77 = arith.mulf %76, %75 : vector<1x512xf32>
    %cst_19 = arith.constant -0.322396457 : f32
    %78 = vector.broadcast %cst_19 : f32 to vector<1x512xf32>
    %79 = arith.addf %77, %78 : vector<1x512xf32>
    %80 = arith.mulf %79, %75 : vector<1x512xf32>
    %cst_20 = arith.constant -2.40075827 : f32
    %81 = vector.broadcast %cst_20 : f32 to vector<1x512xf32>
    %82 = arith.addf %80, %81 : vector<1x512xf32>
    %83 = arith.mulf %82, %75 : vector<1x512xf32>
    %cst_21 = arith.constant -2.54973245 : f32
    %84 = vector.broadcast %cst_21 : f32 to vector<1x512xf32>
    %85 = arith.addf %83, %84 : vector<1x512xf32>
    %86 = arith.mulf %85, %75 : vector<1x512xf32>
    %cst_22 = arith.constant 4.37466431 : f32
    %87 = vector.broadcast %cst_22 : f32 to vector<1x512xf32>
    %88 = arith.addf %86, %87 : vector<1x512xf32>
    %89 = arith.mulf %88, %75 : vector<1x512xf32>
    %cst_23 = arith.constant 2.938164 : f32
    %90 = vector.broadcast %cst_23 : f32 to vector<1x512xf32>
    %91 = arith.addf %89, %90 : vector<1x512xf32>
    %cst_24 = arith.constant 0.00778469583 : f32
    %92 = vector.broadcast %cst_24 : f32 to vector<1x512xf32>
    %93 = arith.mulf %92, %75 : vector<1x512xf32>
    %cst_25 = arith.constant 0.322467119 : f32
    %94 = vector.broadcast %cst_25 : f32 to vector<1x512xf32>
    %95 = arith.addf %93, %94 : vector<1x512xf32>
    %96 = arith.mulf %95, %75 : vector<1x512xf32>
    %cst_26 = arith.constant 2.44513416 : f32
    %97 = vector.broadcast %cst_26 : f32 to vector<1x512xf32>
    %98 = arith.addf %96, %97 : vector<1x512xf32>
    %99 = arith.mulf %98, %75 : vector<1x512xf32>
    %cst_27 = arith.constant 3.7544086 : f32
    %100 = vector.broadcast %cst_27 : f32 to vector<1x512xf32>
    %101 = arith.addf %99, %100 : vector<1x512xf32>
    %102 = arith.mulf %101, %75 : vector<1x512xf32>
    %cst_28 = arith.constant 1.000000e+00 : f32
    %103 = vector.broadcast %cst_28 : f32 to vector<1x512xf32>
    %104 = arith.addf %102, %103 : vector<1x512xf32>
    %105 = arith.divf %91, %104 : vector<1x512xf32>
    %cst_29 = arith.constant 0.000000e+00 : f32
    %106 = vector.broadcast %cst_29 : f32 to vector<1x512xf32>
    %107 = arith.cmpf olt, %33, %106 : vector<1x512xf32>
    %cst_30 = arith.constant 0.000000e+00 : f32
    %108 = vector.broadcast %cst_30 : f32 to vector<1x512xf32>
    %109 = arith.subf %108, %105 : vector<1x512xf32>
    %110 = arith.select %107, %105, %109 : vector<1x512xi1>, vector<1x512xf32>
    %cst_31 = arith.constant 2.425000e-02 : f32
    %111 = vector.broadcast %cst_31 : f32 to vector<1x512xf32>
    %112 = arith.cmpf olt, %71, %111 : vector<1x512xf32>
    %113 = arith.select %112, %110, %68 : vector<1x512xi1>, vector<1x512xf32>
    %c0_32 = arith.constant 0 : index
    %c0_33 = arith.constant 0 : index
    %114 = vector.load %arg2[%c0_32, %c0_33] : memref<1x512xf32, #tpu.memory_space<vmem>>, vector<1x512xf32>
    %cst_34 = arith.constant 1.000000e-01 : f32
    %115 = vector.broadcast %cst_34 : f32 to vector<1x512xf32>
    %116 = arith.mulf %115, %113 : vector<1x512xf32>
    %117 = arith.addf %114, %116 : vector<1x512xf32>
    %c0_35 = arith.constant 0 : index
    %c0_36 = arith.constant 0 : index
    %118 = vector.load %arg3[%c0_35, %c0_36] : memref<1x512xf32, #tpu.memory_space<vmem>>, vector<1x512xf32>
    tpu.vector_store %arg3[%c0_35, %c0_36], %117 {strides = array<i32>} : memref<1x512xf32, #tpu.memory_space<vmem>>, vector<1x512xf32>,
    return
  }
  func.func @transform_0(%arg0: i32, %arg1: memref<1xi32, #tpu.memory_space<smem>>) -> (i32, i32) {
    %c0_i32 = arith.constant 0 : i32
    %c0_i32_0 = arith.constant 0 : i32
    return %arg0, %c0_i32 : i32, i32
  }
  func.func @transform_1(%arg0: i32, %arg1: memref<1xi32, #tpu.memory_space<smem>>) -> (i32, i32) {
    %c0_i32 = arith.constant 0 : i32
    %c0_i32_0 = arith.constant 0 : i32
    return %arg0, %c0_i32 : i32, i32
  }
}

</mosaic_0001>

<llo_original>
// kernel: _all_views_forward.4
$region0: #{_all_views_forward.4}
  #allocation0 [shape = 'u32[]', space=smem, size = 0x4, offset = 0x4, fixed_abs, tag = 'smem constant byte address 0x4 - core index']
  #allocation1 [shape = 'u32[144,128]{1,0:T(1,128)}', space=vmem, size = 0x12000, scoped, tag = 'internal scratch']
  #allocation2 [shape = 's32[1]{0}', space=sflag, size = 0x4, scoped, tag = 'scoped memory for _all_views_forward.4']
  #allocation3 [shape = 's32[1]{0:T(128)S(6)}', space=smem, size = 0x200, scoped, tag = 'prefetched SMEM operand 0']
  %s0 = inlined_call_operand.<no memory space> [shape: s32[1], index: 0, kind: input, shape index: {}]
  %s1 = inlined_call_operand.vmem [shape: f32[1,512], index: 1, kind: input, shape index: {}]
  %s2 = inlined_call_operand.vmem [shape: f32[1,512], index: 2, kind: output, shape index: {}]
  %s3 = sld [smem:[#allocation0]]
  $region14: #{_all_views_forward.4} parent=0
    _
  %s5 = ssub.s32 1, %s3
  %s6 = scalar_select 0, %s5, %s3
  %7 = sst [smem:[#allocation3]] %s0
  // Predicated region
  $region2: #{_all_views_forward.4} parent=0 // pred_check
    _
  $region3: #{_all_views_forward.4} parent=0 // pred_check_branch
    %9 = sbr.rel (0) target = $region5
  $region4: #{_all_views_forward.4} parent=0 // pred_region
    _
  $region5: #{_all_views_forward.4} parent=0 // pred_fallthru
    _
  %s10 = smul.u32 0, 512
  %v11 = vlaneseq
  %v12 = vshrl.u32 %v11, 7
  %v13 = vlaneseq
  %v14 = vand.u32 %v13, 127
  %v15 = vadd.s32 %v14, 128
  %v16 = vadd.s32 %v14, 256
  %v17 = vadd.s32 %v14, 384
  %v18 = vmul.u32 %v12, 512
  %v19 = vstv %s10
  %v20 = vadd.s32 %v19, %v18
  %v21 = vadd.s32 %v20, %v14
  %v22 = vadd.s32 %v20, %v15
  %v23 = vadd.s32 %v20, %v16
  %v24 = vadd.s32 %v20, %v17
  %s25 = sld [smem:[#allocation3]]
  %s26 = smul.u32 %s25, 2654435761
  %v27 = vstv %s26
  %v28 = vxor.u32 %v21, %v27
  %v29 = vxor.u32 %v22, %v27
  %v30 = vxor.u32 %v23, %v27
  %v31 = vxor.u32 %v24, %v27
  %v32 = vshrl.u32 %v28, 16
  %v33 = vshrl.u32 %v29, 16
  %v34 = vshrl.u32 %v30, 16
  %v35 = vshrl.u32 %v31, 16
  %v36 = vxor.u32 %v28, %v32
  %v37 = vxor.u32 %v29, %v33
  %v38 = vxor.u32 %v30, %v34
  %v39 = vxor.u32 %v31, %v35
  %v40 = vmul.u32 %v36, 2146121005
  %v41 = vmul.u32 %v37, 2146121005
  %v42 = vmul.u32 %v38, 2146121005
  %v43 = vmul.u32 %v39, 2146121005
  %v44 = vshrl.u32 %v40, 15
  %v45 = vshrl.u32 %v41, 15
  %v46 = vshrl.u32 %v42, 15
  %v47 = vshrl.u32 %v43, 15
  %v48 = vxor.u32 %v40, %v44
  %v49 = vxor.u32 %v41, %v45
  %v50 = vxor.u32 %v42, %v46
  %v51 = vxor.u32 %v43, %v47
  %v52 = vmul.u32 %v48, 2221713035
  %v53 = vmul.u32 %v49, 2221713035
  %v54 = vmul.u32 %v50, 2221713035
  %v55 = vmul.u32 %v51, 2221713035
  %v56 = vshrl.u32 %v52, 16
  %v57 = vshrl.u32 %v53, 16
  %v58 = vshrl.u32 %v54, 16
  %v59 = vshrl.u32 %v55, 16
  %v60 = vxor.u32 %v52, %v56
  %v61 = vxor.u32 %v53, %v57
  %v62 = vxor.u32 %v54, %v58
  %v63 = vxor.u32 %v55, %v59
  %v64 = vshrl.u32 %v60, 8
  %v65 = vshrl.u32 %v61, 8
  %v66 = vshrl.u32 %v62, 8
  %v67 = vshrl.u32 %v63, 8
  %v68 = vcvt.s32.f32 %v64
  %v69 = vcvt.s32.f32 %v65
  %v70 = vcvt.s32.f32 %v66
  %v71 = vcvt.s32.f32 %v67
  %v72 = vadd.f32 %v68, 0.5
  %v73 = vadd.f32 %v69, 0.5
  %v74 = vadd.f32 %v70, 0.5
  %v75 = vadd.f32 %v71, 0.5
  %v76 = vmul.f32 %v72, 5.9604645e-08
  %v77 = vmul.f32 %v73, 5.9604645e-08
  %v78 = vmul.f32 %v74, 5.9604645e-08
  %v79 = vmul.f32 %v75, 5.9604645e-08
  %v80 = vsub.f32 %v76, 0.5
  %v81 = vsub.f32 %v77, 0.5
  %v82 = vsub.f32 %v78, 0.5
  %v83 = vsub.f32 %v79, 0.5
  %v84 = vmul.f32 %v80, %v80
  %v85 = vmul.f32 %v81, %v81
  %v86 = vmul.f32 %v82, %v82
  %v87 = vmul.f32 %v83, %v83
  %v88 = vmul.f32 %v84, -39.69683
  %v89 = vmul.f32 %v85, -39.69683
  %v90 = vmul.f32 %v86, -39.69683
  %v91 = vmul.f32 %v87, -39.69683
  %v92 = vadd.f32 %v88, 220.9461
  %v93 = vadd.f32 %v89, 220.9461
  %v94 = vadd.f32 %v90, 220.9461
  %v95 = vadd.f32 %v91, 220.9461
  %v96 = vmul.f32 %v92, %v84
  %v97 = vmul.f32 %v93, %v85
  %v98 = vmul.f32 %v94, %v86
  %v99 = vmul.f32 %v95, %v87
  %v100 = vadd.f32 %v96, -275.9285
  %v101 = vadd.f32 %v97, -275.9285
  %v102 = vadd.f32 %v98, -275.9285
  %v103 = vadd.f32 %v99, -275.9285
  %v104 = vmul.f32 %v100, %v84
  %v105 = vmul.f32 %v101, %v85
  %v106 = vmul.f32 %v102, %v86
  %v107 = vmul.f32 %v103, %v87
  %v108 = vadd.f32 %v104, 138.35776
  %v109 = vadd.f32 %v105, 138.35776
  %v110 = vadd.f32 %v106, 138.35776
  %v111 = vadd.f32 %v107, 138.35776
  %v112 = vmul.f32 %v108, %v84
  %v113 = vmul.f32 %v109, %v85
  %v114 = vmul.f32 %v110, %v86
  %v115 = vmul.f32 %v111, %v87
  %v116 = vadd.f32 %v112, -30.664799
  %v117 = vadd.f32 %v113, -30.664799
  %v118 = vadd.f32 %v114, -30.664799
  %v119 = vadd.f32 %v115, -30.664799
  %v120 = vmul.f32 %v116, %v84
  %v121 = vmul.f32 %v117, %v85
  %v122 = vmul.f32 %v118, %v86
  %v123 = vmul.f32 %v119, %v87
  %v124 = vadd.f32 %v120, 2.5066283
  %v125 = vadd.f32 %v121, 2.5066283
  %v126 = vadd.f32 %v122, 2.5066283
  %v127 = vadd.f32 %v123, 2.5066283
  %v128 = vmul.f32 %v84, -54.476097
  %v129 = vmul.f32 %v85, -54.476097
  %v130 = vmul.f32 %v86, -54.476097
  %v131 = vmul.f32 %v87, -54.476097
  %v132 = vadd.f32 %v128, 161.58583
  %v133 = vadd.f32 %v129, 161.58583
  %v134 = vadd.f32 %v130, 161.58583
  %v135 = vadd.f32 %v131, 161.58583
  %v136 = vmul.f32 %v132, %v84
  %v137 = vmul.f32 %v133, %v85
  %v138 = vmul.f32 %v134, %v86
  %v139 = vmul.f32 %v135, %v87
  %v140 = vadd.f32 %v136, -155.69897
  %v141 = vadd.f32 %v137, -155.69897
  %v142 = vadd.f32 %v138, -155.69897
  %v143 = vadd.f32 %v139, -155.69897
  %v144 = vmul.f32 %v140, %v84
  %v145 = vmul.f32 %v141, %v85
  %v146 = vmul.f32 %v142, %v86
  %v147 = vmul.f32 %v143, %v87
  %v148 = vadd.f32 %v144, 66.801315
  %v149 = vadd.f32 %v145, 66.801315
  %v150 = vadd.f32 %v146, 66.801315
  %v151 = vadd.f32 %v147, 66.801315
  %v152 = vmul.f32 %v148, %v84
  %v153 = vmul.f32 %v149, %v85
  %v154 = vmul.f32 %v150, %v86
  %v155 = vmul.f32 %v151, %v87
  %v156 = vadd.f32 %v152, -13.280682
  %v157 = vadd.f32 %v153, -13.280682
  %v158 = vadd.f32 %v154, -13.280682
  %v159 = vadd.f32 %v155, -13.280682
  %v160 = vmul.f32 %v156, %v84
  %v161 = vmul.f32 %v157, %v85
  %v162 = vmul.f32 %v158, %v86
  %v163 = vmul.f32 %v159, %v87
  %v164 = vadd.f32 %v160, 1.0
  %v165 = vadd.f32 %v161, 1.0
  %v166 = vadd.f32 %v162, 1.0
  %v167 = vadd.f32 %v163, 1.0
  %v168 = vmul.f32 %v80, %v124
  %v169 = vmul.f32 %v81, %v125
  %v170 = vmul.f32 %v82, %v126
  %v171 = vmul.f32 %v83, %v127
  %v172 = vrcp.pop %v164
  %v173 = vmul.f32 %v168, %v172
  %v174 = vrcp.pop %v165
  %v175 = vmul.f32 %v169, %v174
  %v176 = vrcp.pop %v166
  %v177 = vmul.f32 %v170, %v176
  %v178 = vrcp.pop %v167
  %v179 = vmul.f32 %v171, %v178
  %v180 = vsub.f32 1.0, %v76
  %v181 = vsub.f32 1.0, %v77
  %v182 = vsub.f32 1.0, %v78
  %v183 = vsub.f32 1.0, %v79
  %v184 = vmin.f32 %v76, %v180
  %v185 = vmin.f32 %v77, %v181
  %v186 = vmin.f32 %v78, %v182
  %v187 = vmin.f32 %v79, %v183
  %v188 = vlog2.pop %v184
  %v189 = vmul.f32 %v188, 0.6931472
  %v190 = vlog2.pop %v185
  %v191 = vmul.f32 %v190, 0.6931472
  %v192 = vlog2.pop %v186
  %v193 = vmul.f32 %v192, 0.6931472
  %v194 = vlog2.pop %v187
  %v195 = vmul.f32 %v194, 0.6931472
  %v196 = vmul.f32 %v189, -2.0
  %v197 = vmul.f32 %v191, -2.0
  %v198 = vmul.f32 %v193, -2.0
  %v199 = vmul.f32 %v195, -2.0
  %v200 = vrsqrt.pop %v196
  %v201 = vmul.f32 %v196, %v200
  %vm202 = vcmp.eq.f32.partialorder %v196, inf
  %v203 = vsel %vm202, %v196, %v201
  %vm204 = vcmp.eq.f32.partialorder %v196, 0.0
  %v205 = vand.u32 %v196, 2147483648
  %v206 = vsel %vm204, %v205, %v203
  %v207 = vrsqrt.pop %v197
  %v208 = vmul.f32 %v197, %v207
  %vm209 = vcmp.eq.f32.partialorder %v197, inf
  %v210 = vsel %vm209, %v197, %v208
  %vm211 = vcmp.eq.f32.partialorder %v197, 0.0
  %v212 = vand.u32 %v197, 2147483648
  %v213 = vsel %vm211, %v212, %v210
  %v214 = vrsqrt.pop %v198
  %v215 = vmul.f32 %v198, %v214
  %vm216 = vcmp.eq.f32.partialorder %v198, inf
  %v217 = vsel %vm216, %v198, %v215
  %vm218 = vcmp.eq.f32.partialorder %v198, 0.0
  %v219 = vand.u32 %v198, 2147483648
  %v220 = vsel %vm218, %v219, %v217
  %v221 = vrsqrt.pop %v199
  %v222 = vmul.f32 %v199, %v221
  %vm223 = vcmp.eq.f32.partialorder %v199, inf
  %v224 = vsel %vm223, %v199, %v222
  %vm225 = vcmp.eq.f32.partialorder %v199, 0.0
  %v226 = vand.u32 %v199, 2147483648
  %v227 = vsel %vm225, %v226, %v224
  %v228 = vmul.f32 %v206, -0.007784894
  %v229 = vmul.f32 %v213, -0.007784894
  %v230 = vmul.f32 %v220, -0.007784894
  %v231 = vmul.f32 %v227, -0.007784894
  %v232 = vadd.f32 %v228, -0.32239646
  %v233 = vadd.f32 %v229, -0.32239646
  %v234 = vadd.f32 %v230, -0.32239646
  %v235 = vadd.f32 %v231, -0.32239646
  %v236 = vmul.f32 %v232, %v206
  %v237 = vmul.f32 %v233, %v213
  %v238 = vmul.f32 %v234, %v220
  %v239 = vmul.f32 %v235, %v227
  %v240 = vadd.f32 %v236, -2.4007583
  %v241 = vadd.f32 %v237, -2.4007583
  %v242 = vadd.f32 %v238, -2.4007583
  %v243 = vadd.f32 %v239, -2.4007583
  %v244 = vmul.f32 %v240, %v206
  %v245 = vmul.f32 %v241, %v213
  %v246 = vmul.f32 %v242, %v220
  %v247 = vmul.f32 %v243, %v227
  %v248 = vadd.f32 %v244, -2.5497324
  %v249 = vadd.f32 %v245, -2.5497324
  %v250 = vadd.f32 %v246, -2.5497324
  %v251 = vadd.f32 %v247, -2.5497324
  %v252 = vmul.f32 %v248, %v206
  %v253 = vmul.f32 %v249, %v213
  %v254 = vmul.f32 %v250, %v220
  %v255 = vmul.f32 %v251, %v227
  %v256 = vadd.f32 %v252, 4.3746643
  %v257 = vadd.f32 %v253, 4.3746643
  %v258 = vadd.f32 %v254, 4.3746643
  %v259 = vadd.f32 %v255, 4.3746643
  %v260 = vmul.f32 %v256, %v206
  %v261 = vmul.f32 %v257, %v213
  %v262 = vmul.f32 %v258, %v220
  %v263 = vmul.f32 %v259, %v227
  %v264 = vadd.f32 %v260, 2.938164
  %v265 = vadd.f32 %v261, 2.938164
  %v266 = vadd.f32 %v262, 2.938164
  %v267 = vadd.f32 %v263, 2.938164
  %v268 = vmul.f32 %v206, 0.007784696
  %v269 = vmul.f32 %v213, 0.007784696
  %v270 = vmul.f32 %v220, 0.007784696
  %v271 = vmul.f32 %v227, 0.007784696
  %v272 = vadd.f32 %v268, 0.32246712
  %v273 = vadd.f32 %v269, 0.32246712
  %v274 = vadd.f32 %v270, 0.32246712
  %v275 = vadd.f32 %v271, 0.32246712
  %v276 = vmul.f32 %v272, %v206
  %v277 = vmul.f32 %v273, %v213
  %v278 = vmul.f32 %v274, %v220
  %v279 = vmul.f32 %v275, %v227
  %v280 = vadd.f32 %v276, 2.4451342
  %v281 = vadd.f32 %v277, 2.4451342
  %v282 = vadd.f32 %v278, 2.4451342
  %v283 = vadd.f32 %v279, 2.4451342
  %v284 = vmul.f32 %v280, %v206
  %v285 = vmul.f32 %v281, %v213
  %v286 = vmul.f32 %v282, %v220
  %v287 = vmul.f32 %v283, %v227
  %v288 = vadd.f32 %v284, 3.7544086
  %v289 = vadd.f32 %v285, 3.7544086
  %v290 = vadd.f32 %v286, 3.7544086
  %v291 = vadd.f32 %v287, 3.7544086
  %v292 = vmul.f32 %v288, %v206
  %v293 = vmul.f32 %v289, %v213
  %v294 = vmul.f32 %v290, %v220
  %v295 = vmul.f32 %v291, %v227
  %v296 = vadd.f32 %v292, 1.0
  %v297 = vadd.f32 %v293, 1.0
  %v298 = vadd.f32 %v294, 1.0
  %v299 = vadd.f32 %v295, 1.0
  %v300 = vrcp.pop %v296
  %v301 = vmul.f32 %v264, %v300
  %v302 = vrcp.pop %v297
  %v303 = vmul.f32 %v265, %v302
  %v304 = vrcp.pop %v298
  %v305 = vmul.f32 %v266, %v304
  %v306 = vrcp.pop %v299
  %v307 = vmul.f32 %v267, %v306
  %vm308 = vcmp.lt.f32.partialorder %v80, 0.0
  %vm309 = vcmp.lt.f32.partialorder %v81, 0.0
  %vm310 = vcmp.lt.f32.partialorder %v82, 0.0
  %vm311 = vcmp.lt.f32.partialorder %v83, 0.0
  %v312 = vsub.f32 0.0, %v301
  %v313 = vsub.f32 0.0, %v303
  %v314 = vsub.f32 0.0, %v305
  %v315 = vsub.f32 0.0, %v307
  %v316 = vsel %vm308, %v301, %v312
  %v317 = vsel %vm309, %v303, %v313
  %v318 = vsel %vm310, %v305, %v314
  %v319 = vsel %vm311, %v307, %v315
  %vm320 = vcmp.lt.f32.partialorder %v184, 0.02425
  %vm321 = vcmp.lt.f32.partialorder %v185, 0.02425
  %vm322 = vcmp.lt.f32.partialorder %v186, 0.02425
  %vm323 = vcmp.lt.f32.partialorder %v187, 0.02425
  %v324 = vsel %vm320, %v316, %v173
  %v325 = vsel %vm321, %v317, %v175
  %v326 = vsel %vm322, %v318, %v177
  %v327 = vsel %vm323, %v319, %v179
  %v328 = vld [vmem:[%s1] sm:$0xf]
  %v329 = vmul.f32 %v324, 0.1
  %v330 = vmul.f32 %v325, 0.1
  %v331 = vmul.f32 %v326, 0.1
  %v332 = vmul.f32 %v327, 0.1
  %v337 = vcombine.low %v329, %v330
  %v338 = vcombine.low %v331, %v332
  %v340 = vunpack.c.l.s4 1966171168
  %v341 = vunpack.c.0.s8 %v340
  %v342 = vlaneseq
  %v343 = vshrl.u32 %v342, 7
  %v344 = vsub.s32 %v341, %v343
  %v345 = vrot.slane %v337, %v344
  %v347 = vunpack.c.l.s4 1966171168
  %v348 = vunpack.c.0.s8 %v347
  %v349 = vlaneseq
  %v350 = vshrl.u32 %v349, 7
  %v351 = vsub.s32 %v348, %v350
  %v352 = vrot.slane %v338, %v351
  %v353 = vcombine.low %v345, %v352
  %v355 = vunpack.c.l.s4 1966171168
  %v356 = vunpack.c.0.s8 %v355
  %v357 = vlaneseq
  %v358 = vshrl.u32 %v357, 7
  %v359 = vsub.s32 %v356, %v358
  %v360 = vrot.slane %v353, %v359
  %v362 = vadd.f32 %v328, %v360
  %v363 = vlaneseq
  %vm364 = vcmp.ge.s32.totalorder %v363, 0
  %vm365 = vcmp.lt.s32.totalorder %v363, 512
  %vm366 = vmand %vm364, %vm365
  %367 = vst.msk [vmem:[%s2] sm:$0xf] %vm366, %v362
  // Predicated region
  $region6: #{_all_views_forward.4} parent=0 // pred_check
    _
  $region7: #{_all_views_forward.4} parent=0 // pred_check_branch
    %369 = sbr.rel (0) target = $region9
  $region8: #{_all_views_forward.4} parent=0 // pred_region
    _
  $region9: #{_all_views_forward.4} parent=0 // pred_fallthru
    _
  // Predicated region
  $region10: #{_all_views_forward.4} parent=0 // pred_check
    _
  $region11: #{_all_views_forward.4} parent=0 // pred_check_branch
    %371 = sbr.rel (0) target = $region13
  $region12: #{_all_views_forward.4} parent=0 // pred_region
    _
  $region13: #{_all_views_forward.4} parent=0 // pred_fallthru
    _

</llo_original>
